<compile_context>
chip_gen: v6e
topology: v6e:2x2x1
jax: 0.10.0
libtpu: 0.0.40
codegen_flags: <defaults>
</compile_context>

<pallas_src>
import jax
import jax.numpy as jnp
from jax.experimental import pallas as pl
from jax.experimental.pallas import tpu as pltpu

IN_DIM = 769          # fc1 in_features
HID_DIM = 120         # fc1 out_features / fc2 in_features
OUT_DIM = 1           # fc2 out_features
HID_PAD = 128         # hidden dim padded to one lane tile (do NOT pad to 256)

MAX_TB = 2048         # max batch tile (bf16 x => ~6.3 MiB double-buffered)
SINGLE_STEP_MAX = 1024  # below this, a single grid step (per-step overhead wins)
BATCH_ALIGN = 16      # bf16 sublane packing alignment for the batch dim


def _round_up(n, m):
    return ((n + m - 1) // m) * m


def _fnn_kernel(x_ref, w1_ref, b1_ref, w2_ref, b2_ref, o_ref):
    # x_ref:  (TB, 769)   bf16   activation tile
    # w1_ref: (769, 128)  bf16   fc1 weight, (in, out) layout, zero-padded cols
    # b1_ref: (1, 128)    f32
    # w2_ref: (1, 128)    f32    fc2 weight row, zero-padded
    # b2_ref: (1, 1)      f32
    # o_ref:  (TB, 1)     f32    sigmoid logits (narrow, lane-masked store)
    h = jnp.dot(x_ref[...], w1_ref[...], preferred_element_type=jnp.float32)
    h = jnp.maximum(h + b1_ref[...], 0.0)                     # f32 bias + ReLU
    # fc2 has one output neuron: VPU multiply + lane reduction instead of a
    # 128-wide MXU matmul whose columns are 127/128 zero.
    z = jnp.sum(h * w2_ref[...], axis=-1, keepdims=True) + b2_ref[...]
    o_ref[...] = jax.nn.sigmoid(z)                            # f32 EUP math


def prepare_params(w1, b1, w2, b2):
    """One-time weight prep (hoisted out of the per-call forward).

    Args (PyTorch nn.Linear layout):
      w1: (120, 769) f32, b1: (120,) f32, w2: (1, 120) f32, b2: (1,) f32
    """
    w1_p = (jnp.zeros((IN_DIM, HID_PAD), jnp.float32)
            .at[:, :HID_DIM].set(w1.T).astype(jnp.bfloat16))
    b1_p = jnp.zeros((1, HID_PAD), jnp.float32).at[0, :HID_DIM].set(b1)
    # fc2 weight kept as a single f32 row (used on the VPU, not the MXU).
    w2_p = jnp.zeros((1, HID_PAD), jnp.float32).at[0, :HID_DIM].set(w2[0])
    b2_p = jnp.asarray(b2, jnp.float32).reshape(1, 1)
    return w1_p, b1_p, w2_p, b2_p


@jax.jit
def fnn_forward(x, w1_p, b1_p, w2_p, b2_p):
    """Forward pass: x (B, 769) float -> (B, 1) f32 sigmoid outputs.

    For best HBM bandwidth, pass x already in bf16 (the in-jit cast below is
    then a no-op); with f32 x the convert fuses into the pallas_call via
    allow_input_fusion instead of materializing a bf16 copy in HBM.
    """
    B = x.shape[0]
    x = x.astype(jnp.bfloat16)

    # Tile selection (all static Python on shapes).
    B_pad = _round_up(B, BATCH_ALIGN)
    if B_pad <= SINGLE_STEP_MAX:
        steps, TB = 1, B_pad
    else:
        # >= 2 balanced steps so dimension_semantics=("parallel",) actually
        # shards the grid across both v7x TensorCores.
        steps = max(2, pl.cdiv(B_pad, MAX_TB))
        TB = _round_up(pl.cdiv(B_pad, steps), BATCH_ALIGN)
        B_pad = steps * TB            # grid divides evenly -> no boundary blocks
    if B_pad != B:
        x = jnp.pad(x, ((0, B_pad - B), (0, 0)))

    out = pl.pallas_call(
        _fnn_kernel,
        out_shape=jax.ShapeDtypeStruct((B_pad, OUT_DIM), jnp.float32),
        grid_spec=pltpu.PrefetchScalarGridSpec(
            num_scalar_prefetch=0,
            grid=(steps,),
            in_specs=[
                # activations: tiled over batch, full (unpadded) feature dim
                pl.BlockSpec((TB, IN_DIM), lambda i: (i, 0)),
                # weights / biases: resident (constant block index)
                pl.BlockSpec((IN_DIM, HID_PAD), lambda i: (0, 0)),
                pl.BlockSpec((1, HID_PAD), lambda i: (0, 0)),
                pl.BlockSpec((1, HID_PAD), lambda i: (0, 0)),
                pl.BlockSpec((1, 1), lambda i: (0, 0)),
            ],
            # Narrow output: only the valid logit column is ever written.
            out_specs=pl.BlockSpec((TB, OUT_DIM), lambda i: (i, 0)),
        ),
        compiler_params=pltpu.CompilerParams(
            dimension_semantics=("parallel",),          # megacore sharding (v7x)
            allow_input_fusion=[True, False, False, False, False],
            vmem_limit_bytes=32 * 1024 * 1024,
        ),
    )(x, w1_p, b1_p, w2_p, b2_p)

    # Valid outputs: first B rows (column dim is already exactly OUT_DIM).
    return out[:B]


def init_params(key):
    """Deterministic init matching nn.Linear default (uniform +/-1/sqrt(fan_in))."""
    k1, k2, k3, k4 = jax.random.split(key, 4)
    bound1 = 1.0 / jnp.sqrt(float(IN_DIM))
    bound2 = 1.0 / jnp.sqrt(float(HID_DIM))
    w1 = jax.random.uniform(k1, (HID_DIM, IN_DIM), jnp.float32, -bound1, bound1)
    b1 = jax.random.uniform(k2, (HID_DIM,), jnp.float32, -bound1, bound1)
    w2 = jax.random.uniform(k3, (OUT_DIM, HID_DIM), jnp.float32, -bound2, bound2)
    b2 = jax.random.uniform(k4, (OUT_DIM,), jnp.float32, -bound2, bound2)
    return w1, b1, w2, b2


def _reference(x, w1, b1, w2, b2):
    return jax.nn.sigmoid(jnp.maximum(x @ w1.T + b1, 0.0) @ w2.T + b2)


if __name__ == "__main__":
    key = jax.random.PRNGKey(0)
    k_param, k_x1, k_x2 = jax.random.split(key, 3)

    w1, b1, w2, b2 = init_params(k_param)
    # One-time weight preparation (not part of the per-call forward).
    params_p = prepare_params(w1, b1, w2, b2)

    # Batch size matching the module's dataloaders (batch_size=16).
    B = 16
    x = jax.random.normal(k_x1, (B, IN_DIM), jnp.float32)
    out = fnn_forward(x, *params_p)
    jax.block_until_ready(out)
    ref = _reference(x, w1, b1, w2, b2)
    assert out.shape == (B, OUT_DIM)
    # bf16 x / bf16 fc1 weights with f32 accumulation -> loosened tolerance.
    assert jnp.allclose(out, ref, atol=1e-2), "mismatch vs reference (B=16)"

    # Also exercise the batch-padding path (B not a multiple of 16).
    B2 = 20
    x2 = jax.random.normal(k_x2, (B2, IN_DIM), jnp.float32)
    out2 = fnn_forward(x2, *params_p)
    jax.block_until_ready(out2)
    ref2 = _reference(x2, w1, b1, w2, b2)
    assert out2.shape == (B2, OUT_DIM)
    assert jnp.allclose(out2, ref2, atol=1e-2), "mismatch vs reference (B=20)"

    print("KERNEL_OK")
</pallas_src>

<mosaic_0001>
module attributes {stable_mosaic.version = 11 : i64} {
  func.func @_fnn_kernel(%arg0: i32, %arg1: memref<16x769xbf16, #tpu.memory_space<vmem>>, %arg2: memref<769x128xbf16, #tpu.memory_space<vmem>>, %arg3: memref<1x128xf32, #tpu.memory_space<vmem>>, %arg4: memref<1x128xf32, #tpu.memory_space<vmem>>, %arg5: memref<1x1xf32, #tpu.memory_space<vmem>>, %arg6: memref<16x1xf32, #tpu.memory_space<vmem>>) attributes {dimension_semantics = [#tpu.dimension_semantics<parallel>], iteration_bounds = array<i64: 1>, scalar_prefetch = 0 : i64, scratch_operands = 0 : i64, tpu.core_type = #tpu.core_type<tc>, window_params = [{transform_indices = @transform_0, window_bounds = array<i64: 16, 769>}, {pipeline_mode = #tpu.pipeline_mode<synchronous>, transform_indices = @transform_1, window_bounds = array<i64: 769, 128>}, {pipeline_mode = #tpu.pipeline_mode<synchronous>, transform_indices = @transform_2, window_bounds = array<i64: 1, 128>}, {pipeline_mode = #tpu.pipeline_mode<synchronous>, transform_indices = @transform_3, window_bounds = array<i64: 1, 128>}, {pipeline_mode = #tpu.pipeline_mode<synchronous>, transform_indices = @transform_4, window_bounds = array<i64: 1, 1>}, {transform_indices = @transform_5, window_bounds = array<i64: 16, 1>}]} {
    %c0 = arith.constant 0 : index
    %c0_0 = arith.constant 0 : index
    %0 = vector.load %arg1[%c0, %c0_0] : memref<16x769xbf16, #tpu.memory_space<vmem>>, vector<16x769xbf16>
    %c0_1 = arith.constant 0 : index
    %c0_2 = arith.constant 0 : index
    %1 = vector.load %arg2[%c0_1, %c0_2] : memref<769x128xbf16, #tpu.memory_space<vmem>>, vector<769x128xbf16>
    %cst = arith.constant dense<0.000000e+00> : vector<16x128xf32>
    %2 = tpu.matmul %0, %1, %cst {dimension_numbers = #tpu.dot_dimension_numbers<[1], [0], [0], [1], [0, 0, 1, 1], [], []>} : vector<16x769xbf16>, vector<769x128xbf16>, vector<16x128xf32> -> vector<16x128xf32>
    %c0_3 = arith.constant 0 : index
    %c0_4 = arith.constant 0 : index
    %3 = vector.load %arg3[%c0_3, %c0_4] : memref<1x128xf32, #tpu.memory_space<vmem>>, vector<1x128xf32>
    %4 = vector.broadcast %3 : vector<1x128xf32> to vector<16x128xf32>
    %5 = arith.addf %2, %4 : vector<16x128xf32>
    %cst_5 = arith.constant 0.000000e+00 : f32
    %6 = vector.broadcast %cst_5 : f32 to vector<16x128xf32>
    %7 = arith.maximumf %5, %6 : vector<16x128xf32>
    %c0_6 = arith.constant 0 : index
    %c0_7 = arith.constant 0 : index
    %8 = vector.load %arg4[%c0_6, %c0_7] : memref<1x128xf32, #tpu.memory_space<vmem>>, vector<1x128xf32>
    %9 = vector.broadcast %8 : vector<1x128xf32> to vector<16x128xf32>
    %10 = arith.mulf %7, %9 : vector<16x128xf32>
    %cst_8 = arith.constant dense<0.000000e+00> : vector<16xf32>
    %11 = vector.multi_reduction <add>, %10, %cst_8 [1] : vector<16x128xf32> to vector<16xf32>
    %12 = vector.shape_cast %11 : vector<16xf32> to vector<16x1xf32>
    %c0_9 = arith.constant 0 : index
    %c0_10 = arith.constant 0 : index
    %13 = vector.load %arg5[%c0_9, %c0_10] : memref<1x1xf32, #tpu.memory_space<vmem>>, vector<1x1xf32>
    %14 = vector.broadcast %13 : vector<1x1xf32> to vector<16x1xf32>
    %15 = arith.addf %12, %14 : vector<16x1xf32>
    %16 = arith.negf %15 : vector<16x1xf32>
    %17 = math.exp %16 : vector<16x1xf32>
    %cst_11 = arith.constant 1.000000e+00 : f32
    %18 = vector.broadcast %cst_11 : f32 to vector<16x1xf32>
    %19 = arith.addf %18, %17 : vector<16x1xf32>
    %20 = arith.divf %18, %19 : vector<16x1xf32>
    %c0_12 = arith.constant 0 : index
    %c0_13 = arith.constant 0 : index
    %21 = vector.load %arg6[%c0_12, %c0_13] : memref<16x1xf32, #tpu.memory_space<vmem>>, vector<16x1xf32>
    tpu.vector_store %arg6[%c0_12, %c0_13], %20 {strides = array<i32>} : memref<16x1xf32, #tpu.memory_space<vmem>>, vector<16x1xf32>,
    return
  }
  func.func @transform_0(%arg0: i32) -> (i32, i32) {
    %c0_i32 = arith.constant 0 : i32
    %c0_i32_0 = arith.constant 0 : i32
    return %arg0, %c0_i32 : i32, i32
  }
  func.func @transform_1(%arg0: i32) -> (i32, i32) {
    %c0_i32 = arith.constant 0 : i32
    %c0_i32_0 = arith.constant 0 : i32
    %c0_i32_1 = arith.constant 0 : i32
    return %c0_i32, %c0_i32_0 : i32, i32
  }
  func.func @transform_2(%arg0: i32) -> (i32, i32) {
    %c0_i32 = arith.constant 0 : i32
    %c0_i32_0 = arith.constant 0 : i32
    %c0_i32_1 = arith.constant 0 : i32
    return %c0_i32, %c0_i32_0 : i32, i32
  }
  func.func @transform_3(%arg0: i32) -> (i32, i32) {
    %c0_i32 = arith.constant 0 : i32
    %c0_i32_0 = arith.constant 0 : i32
    %c0_i32_1 = arith.constant 0 : i32
    return %c0_i32, %c0_i32_0 : i32, i32
  }
  func.func @transform_4(%arg0: i32) -> (i32, i32) {
    %c0_i32 = arith.constant 0 : i32
    %c0_i32_0 = arith.constant 0 : i32
    %c0_i32_1 = arith.constant 0 : i32
    return %c0_i32, %c0_i32_0 : i32, i32
  }
  func.func @transform_5(%arg0: i32) -> (i32, i32) {
    %c0_i32 = arith.constant 0 : i32
    %c0_i32_0 = arith.constant 0 : i32
    return %arg0, %c0_i32 : i32, i32
  }
}

</mosaic_0001>

<llo_original>
// kernel: fnn_forward.2
$region0: #{fnn_forward.2}
  #allocation0 [shape = 'u32[]', space=smem, size = 0x4, offset = 0x4, fixed_abs, tag = 'smem constant byte address 0x4 - core index']
  #allocation1 [shape = 'u32[144,128]{1,0:T(1,128)}', space=vmem, size = 0x12000, scoped, tag = 'internal scratch']
  #allocation2 [shape = 'f32[1,1]{1,0:T(1,128)S(1)}', space=vmem, size = 0x200, scoped, tag = 'scoped memory for fnn_forward.2']
  %s0 = inlined_call_operand.hbm [shape: bf16[769,128], index: 0, kind: input, shape index: {}]
  %s1 = inlined_call_operand.vmem [shape: f32[1,128], index: 1, kind: input, shape index: {}]
  %s2 = inlined_call_operand.vmem [shape: f32[1,128], index: 2, kind: input, shape index: {}]
  %s3 = inlined_call_operand.<no memory space> [shape: f32[1,1], index: 3, kind: input, shape index: {}]
  %s4 = inlined_call_operand.hbm [shape: f32[16,769], index: 4, kind: input, shape index: {}]
  %s5 = inlined_call_operand.vmem [shape: f32[16,1], index: 5, kind: output, shape index: {}]
  %s6 = sld [smem:[#allocation0]]
  $region38: #{fnn_forward.2} parent=0
    _
  %s8 = ssub.s32 1, %s6
  %s9 = scalar_select 0, %s8, %s6
  %v10 = vstv %s3
  %11 = vst [vmem:[#allocation2] sm:$0x1] %v10
  $region1: #{fnn_forward.2} parent=0
    #allocation3 [shape = 'u8[57344]{0}', space=vmem, size = 0xe000, scoped, tag = 'operand span for operand 4']
    #allocation4 [shape = 's32[1]{0}', space=sflag, size = 0x4, scoped, tag = 'scoped memory for fnn_forward.2']
    #allocation5 [shape = 'u8[198656]{0}', space=vmem, size = 0x30800, scoped, tag = 'input window, operand 1, single buffered']
    #allocation6 [shape = 's32[1]{0}', space=sflag, size = 0x4, scoped, tag = 'scoped memory for fnn_forward.2']
    #allocation7 [shape = 'u8[28672]{0}', space=vmem, size = 0x7000, dematerialized = true, scoped, tag = 'FusionAdapter Buffer %fusion.1 = bf16[16,769]{1,0:T(8,128)(2,1)} fusion(%param_4.1), kind=kLoop, calls=%fused_computation.1.clone, metadata={op_name="jit(fnn_forward)/convert_element_type" stack_frame_id=7}']
    %12 = vsyncpa [#allocation4], 0
    %13 = vsyncpa [#allocation6], 0
    // Predicated region
    $region2: #{fnn_forward.2} parent=1 // pred_check
      _
    $region3: #{fnn_forward.2} parent=1 // pred_check_branch
      %15 = sbr.rel (0) target = $region5
    $region4: #{fnn_forward.2} parent=1 // pred_region
      %s17 = ssub.s32 1792, 1792
      %18 = vsyncadd [#allocation4], %s17
      %s19 = sshll.u32 [#allocation3], 4
      %s20 = int_to_ptr.vmem [resolvable:$true] %s19
      %25 = dma.hbm_to_vmem [thread:$0]  %s4, 1792, %s20, [#allocation4], 896, 896, 56
    $region5: #{fnn_forward.2} parent=1 // pred_fallthru
      _
    // Predicated region
    $region6: #{fnn_forward.2} parent=1 // pred_check
      _
    $region7: #{fnn_forward.2} parent=1 // pred_check_branch
      %27 = sbr.rel (0) target = $region9
    $region8: #{fnn_forward.2} parent=1 // pred_region
      %s29 = ssub.s32 6208, 6208
      %30 = vsyncadd [#allocation6], %s29
      %s31 = sshll.u32 [#allocation5], 4
      %s32 = int_to_ptr.vmem [resolvable:$true] %s31
      %37 = dma.hbm_to_vmem [thread:$0]  %s0, 6208, %s32, [#allocation6], 64, 64, 4
    $region9: #{fnn_forward.2} parent=1 // pred_fallthru
      _
    // Predicated region
    $region10: #{fnn_forward.2} parent=1 // pred_check
      _
    $region11: #{fnn_forward.2} parent=1 // pred_check_branch
      %39 = sbr.rel (0) target = $region13
    $region12: #{fnn_forward.2} parent=1 // pred_region
      _
    $region13: #{fnn_forward.2} parent=1 // pred_fallthru
      _
    // Predicated region
    $region14: #{fnn_forward.2} parent=1 // pred_check
      _
    $region15: #{fnn_forward.2} parent=1 // pred_check_branch
      %41 = sbr.rel (0) target = $region17
    $region16: #{fnn_forward.2} parent=1 // pred_region
      _
    $region17: #{fnn_forward.2} parent=1 // pred_fallthru
      _
    // Predicated region
    $region18: #{fnn_forward.2} parent=1 // pred_check
      _
    $region19: #{fnn_forward.2} parent=1 // pred_check_branch
      %43 = sbr.rel (0) target = $region21
    $region20: #{fnn_forward.2} parent=1 // pred_region
      _
    $region21: #{fnn_forward.2} parent=1 // pred_fallthru
      _
    // Predicated region
    $region22: #{fnn_forward.2} parent=1 // pred_check
      _
    $region23: #{fnn_forward.2} parent=1 // pred_check_branch
      %45 = sbr.rel (0) target = $region25
    $region24: #{fnn_forward.2} parent=1 // pred_region
      %46 = dma.done [#allocation4], 1792
    $region25: #{fnn_forward.2} parent=1 // pred_fallthru
      _
    // Predicated region
    $region26: #{fnn_forward.2} parent=1 // pred_check
      _
    $region27: #{fnn_forward.2} parent=1 // pred_check_branch
      %48 = sbr.rel (0) target = $region29
    $region28: #{fnn_forward.2} parent=1 // pred_region
      %49 = dma.done [#allocation6], 6208
    $region29: #{fnn_forward.2} parent=1 // pred_fallthru
      _
    %v50 = vld [vmem:[#allocation3] sm:$0xff]
    %51 = xla_tuple %v50
    %52 = xla_tuple %51
    %53 = xla_tuple %v50
    %v54 = vpack.c.bf16 0.0, %v50
    %s56 = ssub.s32 16, 1
    %57 = vst [vmem:[#allocation7] sm:%s56] %v54
    %s58 = scalar_lea.vmem [#allocation3], 8
    %v59 = vld [vmem:[%s58] sm:$0xff]
    %60 = xla_tuple %v59
    %61 = xla_tuple %60
    %62 = xla_tuple %v59
    %s63 = scalar_lea.vmem [#allocation7], 4
    %v64 = vpack.c.bf16 0.0, %v59
    %s66 = ssub.s32 16, 1
    %67 = vst [vmem:[%s63] sm:%s66] %v64
    %s68 = scalar_lea.vmem [#allocation3], 16
    %v69 = vld [vmem:[%s68] sm:$0xff]
    %70 = xla_tuple %v69
    %71 = xla_tuple %70
    %72 = xla_tuple %v69
    %s73 = scalar_lea.vmem [#allocation7], 8
    %v74 = vpack.c.bf16 0.0, %v69
    %s76 = ssub.s32 16, 1
    %77 = vst [vmem:[%s73] sm:%s76] %v74
    %s78 = scalar_lea.vmem [#allocation3], 24
    %v79 = vld [vmem:[%s78] sm:$0xff]
    %80 = xla_tuple %v79
    %81 = xla_tuple %80
    %82 = xla_tuple %v79
    %s83 = scalar_lea.vmem [#allocation7], 12
    %v84 = vpack.c.bf16 0.0, %v79
    %s86 = ssub.s32 16, 1
    %87 = vst [vmem:[%s83] sm:%s86] %v84
    %s88 = scalar_lea.vmem [#allocation3], 32
    %v89 = vld [vmem:[%s88] sm:$0xff]
    %90 = xla_tuple %v89
    %91 = xla_tuple %90
    %92 = xla_tuple %v89
    %s93 = scalar_lea.vmem [#allocation7], 16
    %v94 = vpack.c.bf16 0.0, %v89
    %s96 = ssub.s32 16, 1
    %97 = vst [vmem:[%s93] sm:%s96] %v94
    %s98 = scalar_lea.vmem [#allocation3], 40
    %v99 = vld [vmem:[%s98] sm:$0xff]
    %100 = xla_tuple %v99
    %101 = xla_tuple %100
    %102 = xla_tuple %v99
    %s103 = scalar_lea.vmem [#allocation7], 20
    %v104 = vpack.c.bf16 0.0, %v99
    %s106 = ssub.s32 16, 1
    %107 = vst [vmem:[%s103] sm:%s106] %v104
    %s108 = scalar_lea.vmem [#allocation3], 48
    %v109 = vld [vmem:[%s108] sm:$0xff]
    %110 = xla_tuple %v109
    %111 = xla_tuple %110
    %112 = xla_tuple %v109
    %s113 = scalar_lea.vmem [#allocation7], 24
    %v114 = vpack.c.bf16 0.0, %v109
    %s116 = ssub.s32 16, 1
    %117 = vst [vmem:[%s113] sm:%s116] %v114
    %s118 = scalar_lea.vmem [#allocation3], 56
    %v119 = vld [vmem:[%s118] sm:$0xff]
    %120 = xla_tuple %v119
    %121 = xla_tuple %120
    %122 = xla_tuple %v119
    %s123 = scalar_lea.vmem [#allocation7], 28
    %v124 = vpack.c.bf16 0.0, %v119
    %s126 = ssub.s32 16, 1
    %127 = vst [vmem:[%s123] sm:%s126] %v124
    %s128 = scalar_lea.vmem [#allocation3], 64
    %v129 = vld [vmem:[%s128] sm:$0xff]
    %130 = xla_tuple %v129
    %131 = xla_tuple %130
    %132 = xla_tuple %v129
    %s133 = scalar_lea.vmem [#allocation7], 32
    %v134 = vpack.c.bf16 0.0, %v129
    %s136 = ssub.s32 16, 1
    %137 = vst [vmem:[%s133] sm:%s136] %v134
    %s138 = scalar_lea.vmem [#allocation3], 72
    %v139 = vld [vmem:[%s138] sm:$0xff]
    %140 = xla_tuple %v139
    %141 = xla_tuple %140
    %142 = xla_tuple %v139
    %s143 = scalar_lea.vmem [#allocation7], 36
    %v144 = vpack.c.bf16 0.0, %v139
    %s146 = ssub.s32 16, 1
    %147 = vst [vmem:[%s143] sm:%s146] %v144
    %s148 = scalar_lea.vmem [#allocation3], 80
    %v149 = vld [vmem:[%s148] sm:$0xff]
    %150 = xla_tuple %v149
    %151 = xla_tuple %150
    %152 = xla_tuple %v149
    %s153 = scalar_lea.vmem [#allocation7], 40
    %v154 = vpack.c.bf16 0.0, %v149
    %s156 = ssub.s32 16, 1
    %157 = vst [vmem:[%s153] sm:%s156] %v154
    %s158 = scalar_lea.vmem [#allocation3], 88
    %v159 = vld [vmem:[%s158] sm:$0xff]
    %160 = xla_tuple %v159
    %161 = xla_tuple %160
    %162 = xla_tuple %v159
    %s163 = scalar_lea.vmem [#allocation7], 44
    %v164 = vpack.c.bf16 0.0, %v159
    %s166 = ssub.s32 16, 1
    %167 = vst [vmem:[%s163] sm:%s166] %v164
    %s168 = scalar_lea.vmem [#allocation3], 96
    %v169 = vld [vmem:[%s168] sm:$0xff]
    %170 = xla_tuple %v169
    %171 = xla_tuple %170
    %172 = xla_tuple %v169
    %s173 = scalar_lea.vmem [#allocation7], 48
    %v174 = vpack.c.bf16 0.0, %v169
    %s176 = ssub.s32 16, 1
    %177 = vst [vmem:[%s173] sm:%s176] %v174
    %s178 = scalar_lea.vmem [#allocation3], 104
    %v179 = vld [vmem:[%s178] sm:$0xff]
    %180 = xla_tuple %v179
    %181 = xla_tuple %180
    %182 = xla_tuple %v179
    %s183 = scalar_lea.vmem [#allocation7], 52
    %v184 = vpack.c.bf16 0.0, %v179
    %s186 = ssub.s32 16, 1
    %187 = vst [vmem:[%s183] sm:%s186] %v184
    %v189 = vld [vmem:[#allocation7] sm:$0xff]
    %v190 = vld [vmem:[#allocation7 + $0x8] sm:$0xff]
    %v191 = vld [vmem:[#allocation7 + $0x10] sm:$0xff]
    %v192 = vld [vmem:[#allocation7 + $0x18] sm:$0xf]
    %v193 = vld [vmem:[#allocation7 + $0x1c] sm:$0xff]
    %v194 = vld [vmem:[#allocation7 + $0x24] sm:$0xff]
    %v195 = vld [vmem:[#allocation7 + $0x2c] sm:$0xff]
    %v196 = vld [vmem:[#allocation7 + $0x34] sm:$0xf]
    %v197 = vld [vmem:[#allocation5] sm:$0xf]
    %v198 = vld [vmem:[#allocation5 + $0x4] sm:$0xf]
    %v199 = vld [vmem:[#allocation5 + $0x8] sm:$0xf]
    %v200 = vld [vmem:[#allocation5 + $0xc] sm:$0xf]
    %v201 = vld [vmem:[#allocation5 + $0x10] sm:$0xf]
    %v202 = vld [vmem:[#allocation5 + $0x14] sm:$0xf]
    %v203 = vld [vmem:[#allocation5 + $0x18] sm:$0xf]
    %v204 = vld [vmem:[#allocation5 + $0x1c] sm:$0xf]
    %v205 = vld [vmem:[#allocation5 + $0x20] sm:$0xf]
    %v206 = vld [vmem:[#allocation5 + $0x24] sm:$0xf]
    %v207 = vld [vmem:[#allocation5 + $0x28] sm:$0xf]
    %v208 = vld [vmem:[#allocation5 + $0x2c] sm:$0xf]
    %v209 = vld [vmem:[#allocation5 + $0x30] sm:$0xf]
    %v210 = vld [vmem:[#allocation5 + $0x34] sm:$0xf]
    %v211 = vld [vmem:[#allocation5 + $0x38] sm:$0xf]
    %v212 = vld [vmem:[#allocation5 + $0x3c] sm:$0xf]
    %v213 = vld [vmem:[#allocation5 + $0x40] sm:$0xf]
    %v214 = vld [vmem:[#allocation5 + $0x44] sm:$0xf]
    %v215 = vld [vmem:[#allocation5 + $0x48] sm:$0xf]
    %v216 = vld [vmem:[#allocation5 + $0x4c] sm:$0xf]
    %v217 = vld [vmem:[#allocation5 + $0x50] sm:$0xf]
    %v218 = vld [vmem:[#allocation5 + $0x54] sm:$0xf]
    %v219 = vld [vmem:[#allocation5 + $0x58] sm:$0xf]
    %v220 = vld [vmem:[#allocation5 + $0x5c] sm:$0xf]
    %v221 = vld [vmem:[#allocation5 + $0x60] sm:$0xf]
    %v222 = vld [vmem:[#allocation5 + $0x64] sm:$0xf]
    %v223 = vld [vmem:[#allocation5 + $0x68] sm:$0xf]
    %v224 = vld [vmem:[#allocation5 + $0x6c] sm:$0xf]
    %v225 = vld [vmem:[#allocation5 + $0x70] sm:$0xf]
    %v226 = vld [vmem:[#allocation5 + $0x74] sm:$0xf]
    %v227 = vld [vmem:[#allocation5 + $0x78] sm:$0xf]
    %v228 = vld [vmem:[#allocation5 + $0x7c] sm:$0xf]
    %v229 = vld [vmem:[#allocation5 + $0x80] sm:$0xf]
    %v230 = vld [vmem:[#allocation5 + $0x84] sm:$0xf]
    %v231 = vld [vmem:[#allocation5 + $0x88] sm:$0xf]
    %v232 = vld [vmem:[#allocation5 + $0x8c] sm:$0xf]
    %v233 = vld [vmem:[#allocation5 + $0x90] sm:$0xf]
    %v234 = vld [vmem:[#allocation5 + $0x94] sm:$0xf]
    %v235 = vld [vmem:[#allocation5 + $0x98] sm:$0xf]
    %v236 = vld [vmem:[#allocation5 + $0x9c] sm:$0xf]
    %v237 = vld [vmem:[#allocation5 + $0xa0] sm:$0xf]
    %v238 = vld [vmem:[#allocation5 + $0xa4] sm:$0xf]
    %v239 = vld [vmem:[#allocation5 + $0xa8] sm:$0xf]
    %v240 = vld [vmem:[#allocation5 + $0xac] sm:$0xf]
    %v241 = vld [vmem:[#allocation5 + $0xb0] sm:$0xf]
    %v242 = vld [vmem:[#allocation5 + $0xb4] sm:$0xf]
    %v243 = vld [vmem:[#allocation5 + $0xb8] sm:$0xf]
    %v244 = vld [vmem:[#allocation5 + $0xbc] sm:$0xf]
    %v245 = vld [vmem:[#allocation5 + $0xc0] sm:$0xf]
    %v246 = vld [vmem:[#allocation5 + $0xc4] sm:$0xf]
    %v247 = vld [vmem:[#allocation5 + $0xc8] sm:$0xf]
    %v248 = vld [vmem:[#allocation5 + $0xcc] sm:$0xf]
    %v249 = vld [vmem:[#allocation5 + $0xd0] sm:$0xf]
    %v250 = vld [vmem:[#allocation5 + $0xd4] sm:$0xf]
    %v251 = vld [vmem:[#allocation5 + $0xd8] sm:$0xf]
    %v252 = vld [vmem:[#allocation5 + $0xdc] sm:$0xf]
    %v253 = vld [vmem:[#allocation5 + $0xe0] sm:$0xf]
    %v254 = vld [vmem:[#allocation5 + $0xe4] sm:$0xf]
    %v255 = vld [vmem:[#allocation5 + $0xe8] sm:$0xf]
    %v256 = vld [vmem:[#allocation5 + $0xec] sm:$0xf]
    %v257 = vld [vmem:[#allocation5 + $0xf0] sm:$0xf]
    %v258 = vld [vmem:[#allocation5 + $0xf4] sm:$0xf]
    %v259 = vld [vmem:[#allocation5 + $0xf8] sm:$0xf]
    %v260 = vld [vmem:[#allocation5 + $0xfc] sm:$0xf]
    %v261 = vld [vmem:[#allocation5 + $0x100] sm:$0xf]
    %v262 = vld [vmem:[#allocation5 + $0x104] sm:$0xf]
    %v263 = vld [vmem:[#allocation5 + $0x108] sm:$0xf]
    %v264 = vld [vmem:[#allocation5 + $0x10c] sm:$0xf]
    %v265 = vld [vmem:[#allocation5 + $0x110] sm:$0xf]
    %v266 = vld [vmem:[#allocation5 + $0x114] sm:$0xf]
    %v267 = vld [vmem:[#allocation5 + $0x118] sm:$0xf]
    %v268 = vld [vmem:[#allocation5 + $0x11c] sm:$0xf]
    %v269 = vld [vmem:[#allocation5 + $0x120] sm:$0xf]
    %v270 = vld [vmem:[#allocation5 + $0x124] sm:$0xf]
    %v271 = vld [vmem:[#allocation5 + $0x128] sm:$0xf]
    %v272 = vld [vmem:[#allocation5 + $0x12c] sm:$0xf]
    %v273 = vld [vmem:[#allocation5 + $0x130] sm:$0xf]
    %v274 = vld [vmem:[#allocation5 + $0x134] sm:$0xf]
    %v275 = vld [vmem:[#allocation5 + $0x138] sm:$0xf]
    %v276 = vld [vmem:[#allocation5 + $0x13c] sm:$0xf]
    %v277 = vld [vmem:[#allocation5 + $0x140] sm:$0xf]
    %v278 = vld [vmem:[#allocation5 + $0x144] sm:$0xf]
    %v279 = vld [vmem:[#allocation5 + $0x148] sm:$0xf]
    %v280 = vld [vmem:[#allocation5 + $0x14c] sm:$0xf]
    %v281 = vld [vmem:[#allocation5 + $0x150] sm:$0xf]
    %v282 = vld [vmem:[#allocation5 + $0x154] sm:$0xf]
    %v283 = vld [vmem:[#allocation5 + $0x158] sm:$0xf]
    %v284 = vld [vmem:[#allocation5 + $0x15c] sm:$0xf]
    %v285 = vld [vmem:[#allocation5 + $0x160] sm:$0xf]
    %v286 = vld [vmem:[#allocation5 + $0x164] sm:$0xf]
    %v287 = vld [vmem:[#allocation5 + $0x168] sm:$0xf]
    %v288 = vld [vmem:[#allocation5 + $0x16c] sm:$0xf]
    %v289 = vld [vmem:[#allocation5 + $0x170] sm:$0xf]
    %v290 = vld [vmem:[#allocation5 + $0x174] sm:$0xf]
    %v291 = vld [vmem:[#allocation5 + $0x178] sm:$0xf]
    %v292 = vld [vmem:[#allocation5 + $0x17c] sm:$0xf]
    %v293 = vld [vmem:[#allocation5 + $0x180] sm:$0x1]
    %v294 = vld [vmem:[%s1] sm:$0x1]
    %v296 = vlaneseq
    %v297 = vshrl.u32 %v296, 7
    %v298 = vsub.s32 0, %v297
    %v299 = vrot.slane %v294, %v298
    %v309 = vunpack.c.l.b16 %v189
    %v310 = vunpack.c.h.b16 %v189
    %v311 = vunpack.c.l.b16 %v190
    %v312 = vunpack.c.h.b16 %v190
    %v313 = vunpack.c.l.b16 %v191
    %v314 = vunpack.c.h.b16 %v191
    %v315 = vunpack.c.l.b16 %v192
    %v316 = vunpack.c.l.b16 %v193
    %v317 = vunpack.c.h.b16 %v193
    %v318 = vunpack.c.l.b16 %v194
    %v319 = vunpack.c.h.b16 %v194
    %v320 = vunpack.c.l.b16 %v195
    %v321 = vunpack.c.h.b16 %v195
    %v322 = vunpack.c.l.b16 %v196
    %v323 = vpack.c.b16 %v316, %v309
    %v324 = vpack.c.b16 %v317, %v310
    %v325 = vpack.c.b16 %v318, %v311
    %v326 = vpack.c.b16 %v319, %v312
    %v327 = vpack.c.b16 %v320, %v313
    %v328 = vpack.c.b16 %v321, %v314
    %v329 = vpack.c.b16 %v322, %v315
    %v433 = vunpack.c.l.b16 %v197
    %v434 = vunpack.c.l.b16 %v198
    %v435 = vunpack.c.l.b16 %v199
    %v436 = vunpack.c.l.b16 %v200
    %v437 = vunpack.c.l.b16 %v201
    %v438 = vunpack.c.l.b16 %v202
    %v439 = vunpack.c.l.b16 %v203
    %v440 = vunpack.c.l.b16 %v204
    %v441 = vunpack.c.l.b16 %v205
    %v442 = vunpack.c.l.b16 %v206
    %v443 = vunpack.c.l.b16 %v207
    %v444 = vunpack.c.l.b16 %v208
    %v445 = vunpack.c.l.b16 %v209
    %v446 = vunpack.c.l.b16 %v210
    %v447 = vunpack.c.l.b16 %v211
    %v448 = vunpack.c.l.b16 %v212
    %v449 = vunpack.c.l.b16 %v213
    %v450 = vunpack.c.l.b16 %v214
    %v451 = vunpack.c.l.b16 %v215
    %v452 = vunpack.c.l.b16 %v216
    %v453 = vunpack.c.l.b16 %v217
    %v454 = vunpack.c.l.b16 %v218
    %v455 = vunpack.c.l.b16 %v219
    %v456 = vunpack.c.l.b16 %v220
    %v457 = vunpack.c.l.b16 %v221
    %v458 = vunpack.c.l.b16 %v222
    %v459 = vunpack.c.l.b16 %v223
    %v460 = vunpack.c.l.b16 %v224
    %v461 = vunpack.c.l.b16 %v225
    %v462 = vunpack.c.l.b16 %v226
    %v463 = vunpack.c.l.b16 %v227
    %v464 = vunpack.c.l.b16 %v228
    %v465 = vunpack.c.l.b16 %v229
    %v466 = vunpack.c.l.b16 %v230
    %v467 = vunpack.c.l.b16 %v231
    %v468 = vunpack.c.l.b16 %v232
    %v469 = vunpack.c.l.b16 %v233
    %v470 = vunpack.c.l.b16 %v234
    %v471 = vunpack.c.l.b16 %v235
    %v472 = vunpack.c.l.b16 %v236
    %v473 = vunpack.c.l.b16 %v237
    %v474 = vunpack.c.l.b16 %v238
    %v475 = vunpack.c.l.b16 %v239
    %v476 = vunpack.c.l.b16 %v240
    %v477 = vunpack.c.l.b16 %v241
    %v478 = vunpack.c.l.b16 %v242
    %v479 = vunpack.c.l.b16 %v243
    %v480 = vunpack.c.l.b16 %v244
    %v481 = vunpack.c.l.b16 %v245
    %v482 = vunpack.c.l.b16 %v246
    %v483 = vunpack.c.l.b16 %v247
    %v484 = vunpack.c.l.b16 %v248
    %v485 = vunpack.c.l.b16 %v249
    %v486 = vunpack.c.l.b16 %v250
    %v487 = vunpack.c.l.b16 %v251
    %v488 = vunpack.c.l.b16 %v252
    %v489 = vunpack.c.l.b16 %v253
    %v490 = vunpack.c.l.b16 %v254
    %v491 = vunpack.c.l.b16 %v255
    %v492 = vunpack.c.l.b16 %v256
    %v493 = vunpack.c.l.b16 %v257
    %v494 = vunpack.c.l.b16 %v258
    %v495 = vunpack.c.l.b16 %v259
    %v496 = vunpack.c.l.b16 %v260
    %v497 = vunpack.c.l.b16 %v261
    %v498 = vunpack.c.l.b16 %v262
    %v499 = vunpack.c.l.b16 %v263
    %v500 = vunpack.c.l.b16 %v264
    %v501 = vunpack.c.l.b16 %v265
    %v502 = vunpack.c.l.b16 %v266
    %v503 = vunpack.c.l.b16 %v267
    %v504 = vunpack.c.l.b16 %v268
    %v505 = vunpack.c.l.b16 %v269
    %v506 = vunpack.c.l.b16 %v270
    %v507 = vunpack.c.l.b16 %v271
    %v508 = vunpack.c.l.b16 %v272
    %v509 = vunpack.c.l.b16 %v273
    %v510 = vunpack.c.l.b16 %v274
    %v511 = vunpack.c.l.b16 %v275
    %v512 = vunpack.c.l.b16 %v276
    %v513 = vunpack.c.l.b16 %v277
    %v514 = vunpack.c.l.b16 %v278
    %v515 = vunpack.c.l.b16 %v279
    %v516 = vunpack.c.l.b16 %v280
    %v517 = vunpack.c.l.b16 %v281
    %v518 = vunpack.c.l.b16 %v282
    %v519 = vunpack.c.l.b16 %v283
    %v520 = vunpack.c.l.b16 %v284
    %v521 = vunpack.c.l.b16 %v285
    %v522 = vunpack.c.l.b16 %v286
    %v523 = vunpack.c.l.b16 %v287
    %v524 = vunpack.c.l.b16 %v288
    %v525 = vunpack.c.l.b16 %v289
    %v526 = vunpack.c.l.b16 %v290
    %v527 = vunpack.c.l.b16 %v291
    %v528 = vunpack.c.l.b16 %v292
    %v529 = vunpack.c.l.b16 %v293
    %v530 = vpack.c.b16 %v434, %v433
    %v531 = vpack.c.b16 %v436, %v435
    %v532 = vpack.c.b16 %v438, %v437
    %v533 = vpack.c.b16 %v440, %v439
    %v534 = vpack.c.b16 %v442, %v441
    %v535 = vpack.c.b16 %v444, %v443
    %v536 = vpack.c.b16 %v446, %v445
    %v537 = vpack.c.b16 %v448, %v447
    %v538 = vpack.c.b16 %v450, %v449
    %v539 = vpack.c.b16 %v452, %v451
    %v540 = vpack.c.b16 %v454, %v453
    %v541 = vpack.c.b16 %v456, %v455
    %v542 = vpack.c.b16 %v458, %v457
    %v543 = vpack.c.b16 %v460, %v459
    %v544 = vpack.c.b16 %v462, %v461
    %v545 = vpack.c.b16 %v464, %v463
    %v546 = vpack.c.b16 %v466, %v465
    %v547 = vpack.c.b16 %v468, %v467
    %v548 = vpack.c.b16 %v470, %v469
    %v549 = vpack.c.b16 %v472, %v471
    %v550 = vpack.c.b16 %v474, %v473
    %v551 = vpack.c.b16 %v476, %v475
    %v552 = vpack.c.b16 %v478, %v477
    %v553 = vpack.c.b16 %v480, %v479
    %v554 = vpack.c.b16 %v482, %v481
    %v555 = vpack.c.b16 %v484, %v483
    %v556 = vpack.c.b16 %v486, %v485
    %v557 = vpack.c.b16 %v488, %v487
    %v558 = vpack.c.b16 %v490, %v489
    %v559 = vpack.c.b16 %v492, %v491
    %v560 = vpack.c.b16 %v494, %v493
    %v561 = vpack.c.b16 %v496, %v495
    %v562 = vpack.c.b16 %v498, %v497
    %v563 = vpack.c.b16 %v500, %v499
    %v564 = vpack.c.b16 %v502, %v501
    %v565 = vpack.c.b16 %v504, %v503
    %v566 = vpack.c.b16 %v506, %v505
    %v567 = vpack.c.b16 %v508, %v507
    %v568 = vpack.c.b16 %v510, %v509
    %v569 = vpack.c.b16 %v512, %v511
    %v570 = vpack.c.b16 %v514, %v513
    %v571 = vpack.c.b16 %v516, %v515
    %v572 = vpack.c.b16 %v518, %v517
    %v573 = vpack.c.b16 %v520, %v519
    %v574 = vpack.c.b16 %v522, %v521
    %v575 = vpack.c.b16 %v524, %v523
    %v576 = vpack.c.b16 %v526, %v525
    %v577 = vpack.c.b16 %v528, %v527
    %v578 = vpack.c.b16 %v529, %v529
    %vm627 = vcmask 7168
    %v629 = vsel %vm627, %v329, 0
    %vm631 = vcmask 1040384
    %v632 = vsel 0, 4294967295, 65535
    %v633 = vsel %vm631, %v632, 0
    %v635 = vand.u32 %v578, %v633
    %637 = vmatprep.subr.bf16.mxu0 0
    %638 = vmatpush1.bf16.msra.mxu0 %v537
    %639 = vmatprep.subr.bf16.mxu0 0
    %640 = vmatpush1.bf16.msra.mxu0 %v536
    %641 = vmatprep.subr.bf16.mxu0 0
    %642 = vmatpush1.bf16.msra.mxu0 %v535
    %643 = vmatprep.subr.bf16.mxu0 0
    %644 = vmatpush1.bf16.msra.mxu0 %v534
    %645 = vmatprep.subr.bf16.mxu0 0
    %646 = vmatpush1.bf16.msra.mxu0 %v533
    %647 = vmatprep.subr.bf16.mxu0 0
    %648 = vmatpush1.bf16.msra.mxu0 %v532
    %649 = vmatprep.subr.bf16.mxu0 0
    %650 = vmatpush1.bf16.msra.mxu0 %v531
    %651 = vmatprep.subr.bf16.mxu0 0
    %652 = vmatpush1.bf16.msra.mxu0 %v530
    %653 = vmatprep.subr.bf16.mxu0 0
    %654 = vmatpush2.bf16.msra.mxu0 %v545
    %655 = vmatprep.subr.bf16.mxu0 0
    %656 = vmatpush2.bf16.msra.mxu0 %v544
    %657 = vmatprep.subr.bf16.mxu0 0
    %658 = vmatpush2.bf16.msra.mxu0 %v543
    %659 = vmatprep.subr.bf16.mxu0 0
    %660 = vmatpush2.bf16.msra.mxu0 %v542
    %661 = vmatprep.subr.bf16.mxu0 0
    %662 = vmatpush2.bf16.msra.mxu0 %v541
    %663 = vmatprep.subr.bf16.mxu0 0
    %664 = vmatpush2.bf16.msra.mxu0 %v540
    %665 = vmatprep.subr.bf16.mxu0 0
    %666 = vmatpush2.bf16.msra.mxu0 %v539
    %667 = vmatprep.subr.bf16.mxu0 0
    %668 = vmatpush2.bf16.msra.mxu0 %v538
    %669 = vmatprep.mubr.bf16.mxu0 %v324
    %670 = vmatmul.mubr.bf16.gmra.mxu0 %v323
    %v671 = vpop.f32.mrf.mxu0
    %v672 = vadd.f32 %v299, %v671
    %v673 = vpop.f32.mrf.mxu0
    %v674 = vpop.f32.mrf.mxu0
    %v675 = vadd.f32 %v299, %v674
    %v676 = vpop.f32.mrf.mxu0
    %677 = vdwg.mxu0
    %678 = vmatprep.subr.bf16.mxu0 0
    %679 = vmatpush1.bf16.msra.mxu0 %v553
    %680 = vmatprep.subr.bf16.mxu0 0
    %681 = vmatpush1.bf16.msra.mxu0 %v552
    %682 = vmatprep.subr.bf16.mxu0 0
    %683 = vmatpush1.bf16.msra.mxu0 %v551
    %684 = vmatprep.subr.bf16.mxu0 0
    %685 = vmatpush1.bf16.msra.mxu0 %v550
    %686 = vmatprep.subr.bf16.mxu0 0
    %687 = vmatpush1.bf16.msra.mxu0 %v549
    %688 = vmatprep.subr.bf16.mxu0 0
    %689 = vmatpush1.bf16.msra.mxu0 %v548
    %690 = vmatprep.subr.bf16.mxu0 0
    %691 = vmatpush1.bf16.msra.mxu0 %v547
    %692 = vmatprep.subr.bf16.mxu0 0
    %693 = vmatpush1.bf16.msra.mxu0 %v546
    %694 = vmatprep.subr.bf16.mxu0 0
    %695 = vmatpush2.bf16.msra.mxu0 %v561
    %696 = vmatprep.subr.bf16.mxu0 0
    %697 = vmatpush2.bf16.msra.mxu0 %v560
    %698 = vmatprep.subr.bf16.mxu0 0
    %699 = vmatpush2.bf16.msra.mxu0 %v559
    %700 = vmatprep.subr.bf16.mxu0 0
    %701 = vmatpush2.bf16.msra.mxu0 %v558
    %702 = vmatprep.subr.bf16.mxu0 0
    %703 = vmatpush2.bf16.msra.mxu0 %v557
    %704 = vmatprep.subr.bf16.mxu0 0
    %705 = vmatpush2.bf16.msra.mxu0 %v556
    %706 = vmatprep.subr.bf16.mxu0 0
    %707 = vmatpush2.bf16.msra.mxu0 %v555
    %708 = vmatprep.subr.bf16.mxu0 0
    %709 = vmatpush2.bf16.msra.mxu0 %v554
    %710 = vmatprep.mubr.bf16.mxu0 %v326
    %711 = vmatmul.mubr.bf16.gmra.mxu0 %v325
    %v712 = vpop.f32.mrf.mxu0
    %v713 = vadd.f32 %v672, %v712
    %v714 = vpop.f32.mrf.mxu0
    %v715 = vpop.f32.mrf.mxu0
    %v716 = vadd.f32 %v675, %v715
    %v717 = vpop.f32.mrf.mxu0
    %718 = vdwg.mxu0
    %719 = vmatprep.subr.bf16.mxu0 0
    %720 = vmatpush1.bf16.msra.mxu0 %v569
    %721 = vmatprep.subr.bf16.mxu0 0
    %722 = vmatpush1.bf16.msra.mxu0 %v568
    %723 = vmatprep.subr.bf16.mxu0 0
    %724 = vmatpush1.bf16.msra.mxu0 %v567
    %725 = vmatprep.subr.bf16.mxu0 0
    %726 = vmatpush1.bf16.msra.mxu0 %v566
    %727 = vmatprep.subr.bf16.mxu0 0
    %728 = vmatpush1.bf16.msra.mxu0 %v565
    %729 = vmatprep.subr.bf16.mxu0 0
    %730 = vmatpush1.bf16.msra.mxu0 %v564
    %731 = vmatprep.subr.bf16.mxu0 0
    %732 = vmatpush1.bf16.msra.mxu0 %v563
    %733 = vmatprep.subr.bf16.mxu0 0
    %734 = vmatpush1.bf16.msra.mxu0 %v562
    %735 = vmatprep.subr.bf16.mxu0 0
    %736 = vmatpush2.bf16.msra.mxu0 %v577
    %737 = vmatprep.subr.bf16.mxu0 0
    %738 = vmatpush2.bf16.msra.mxu0 %v576
    %739 = vmatprep.subr.bf16.mxu0 0
    %740 = vmatpush2.bf16.msra.mxu0 %v575
    %741 = vmatprep.subr.bf16.mxu0 0
    %742 = vmatpush2.bf16.msra.mxu0 %v574
    %743 = vmatprep.subr.bf16.mxu0 0
    %744 = vmatpush2.bf16.msra.mxu0 %v573
    %745 = vmatprep.subr.bf16.mxu0 0
    %746 = vmatpush2.bf16.msra.mxu0 %v572
    %747 = vmatprep.subr.bf16.mxu0 0
    %748 = vmatpush2.bf16.msra.mxu0 %v571
    %749 = vmatprep.subr.bf16.mxu0 0
    %750 = vmatpush2.bf16.msra.mxu0 %v570
    %751 = vmatprep.mubr.bf16.mxu0 %v328
    %752 = vmatmul.mubr.bf16.gmra.mxu0 %v327
    %v753 = vpop.f32.mrf.mxu0
    %v754 = vadd.f32 %v713, %v753
    %v755 = vpop.f32.mrf.mxu0
    %v756 = vpop.f32.mrf.mxu0
    %v757 = vadd.f32 %v716, %v756
    %v758 = vpop.f32.mrf.mxu0
    %759 = vdwg.mxu0
    %760 = vmatprep.subr.bf16.mxu0 0
    %761 = vmatpush1.bf16.msra.mxu0 0
    %762 = vmatprep.subr.bf16.mxu0 0
    %763 = vmatpush1.bf16.msra.mxu0 0
    %764 = vmatprep.subr.bf16.mxu0 0
    %765 = vmatpush1.bf16.msra.mxu0 0
    %766 = vmatprep.subr.bf16.mxu0 0
    %767 = vmatpush1.bf16.msra.mxu0 0
    %768 = vmatprep.subr.bf16.mxu0 0
    %769 = vmatpush1.bf16.msra.mxu0 0
    %770 = vmatprep.subr.bf16.mxu0 0
    %771 = vmatpush1.bf16.msra.mxu0 0
    %772 = vmatprep.subr.bf16.mxu0 0
    %773 = vmatpush1.bf16.msra.mxu0 0
    %774 = vmatprep.subr.bf16.mxu0 0
    %775 = vmatpush1.bf16.msra.mxu0 %v635
    %776 = vmatprep.subr.bf16.mxu0 0
    %777 = vmatpush2.bf16.msra.mxu0 0
    %778 = vmatprep.subr.bf16.mxu0 0
    %779 = vmatpush2.bf16.msra.mxu0 0
    %780 = vmatprep.subr.bf16.mxu0 0
    %781 = vmatpush2.bf16.msra.mxu0 0
    %782 = vmatprep.subr.bf16.mxu0 0
    %783 = vmatpush2.bf16.msra.mxu0 0
    %784 = vmatprep.subr.bf16.mxu0 0
    %785 = vmatpush2.bf16.msra.mxu0 0
    %786 = vmatprep.subr.bf16.mxu0 0
    %787 = vmatpush2.bf16.msra.mxu0 0
    %788 = vmatprep.subr.bf16.mxu0 0
    %789 = vmatpush2.bf16.msra.mxu0 0
    %790 = vmatprep.subr.bf16.mxu0 0
    %791 = vmatpush2.bf16.msra.mxu0 0
    %792 = vmatprep.mubr.bf16.mxu0 0
    %793 = vmatmul.mubr.bf16.gmra.mxu0 %v629
    %v794 = vpop.f32.mrf.mxu0
    %v795 = vadd.f32 %v754, %v794
    %v796 = vpop.f32.mrf.mxu0
    %v797 = vpop.f32.mrf.mxu0
    %v798 = vadd.f32 %v757, %v797
    %v799 = vpop.f32.mrf.mxu0
    %800 = vdwg.mxu0
    %v801 = vmax.f32 %v795, 0.0
    %v802 = vmax.f32 %v798, 0.0
    %v803 = vld [vmem:[%s2] sm:$0x1]
    %v805 = vlaneseq
    %v806 = vshrl.u32 %v805, 7
    %v807 = vsub.s32 0, %v806
    %v808 = vrot.slane %v803, %v807
    %v810 = vmul.f32 %v801, %v808
    %v811 = vmul.f32 %v802, %v808
    %812 = vadd.xlane.f32.xlu0 %v810
    %v813 = vpop.xlane.xlu0 %812
    %814 = vadd.xlane.f32.xlu0 %v811
    %v815 = vpop.xlane.xlu0 %814
    %v816 = vld [vmem:[#allocation2] sm:$0x1]
    %v818 = vlaneseq
    %v819 = vshrl.u32 %v818, 7
    %v820 = vsub.s32 0, %v819
    %v821 = vrot.slane %v816, %v820
    %v823 = vadd.f32 %v813, %v821
    %v824 = vadd.f32 %v815, %v821
    %v825 = vxor.u32 %v823, 2147483648
    %v826 = vxor.u32 %v824, 2147483648
    %v827 = vmul.f32 %v825, 1.442695
    %v828 = vpow.pop %v827
    %v829 = vmul.f32 %v826, 1.442695
    %v830 = vpow.pop %v829
    %v831 = vadd.f32 %v828, 1.0
    %v832 = vadd.f32 %v830, 1.0
    %v833 = vrcp.pop %v831
    %v834 = vmul.f32 1.0, %v833
    %v835 = vrcp.pop %v832
    %v836 = vmul.f32 1.0, %v835
    %837 = vst.msk [vmem:[%s5] sm:$0xff] %vm627, %v834
    %838 = vst.msk [vmem:[%s5 + $0x8] sm:$0xff] %vm627, %v836
    // Predicated region
    $region30: #{fnn_forward.2} parent=1 // pred_check
      _
    $region31: #{fnn_forward.2} parent=1 // pred_check_branch
      %840 = sbr.rel (0) target = $region33
    $region32: #{fnn_forward.2} parent=1 // pred_region
      _
    $region33: #{fnn_forward.2} parent=1 // pred_fallthru
      _
    // Predicated region
    $region34: #{fnn_forward.2} parent=1 // pred_check
      _
    $region35: #{fnn_forward.2} parent=1 // pred_check_branch
      %842 = sbr.rel (0) target = $region37
    $region36: #{fnn_forward.2} parent=1 // pred_region
      _
    $region37: #{fnn_forward.2} parent=1 // pred_fallthru
      _
    %843 = vsyncpa [#allocation4], 1
    %844 = vsyncpa [#allocation6], 1

</llo_original>
